<compile_context>
chip_gen: v7x
topology: tpu7x:2x2x1
jax: 0.10.0
libtpu: 0.0.40
codegen_flags: <defaults>
</compile_context>

<pallas_src>
import functools
import math

import jax
import jax.numpy as jnp
from jax.experimental import pallas as pl
from jax.experimental.pallas import tpu as pltpu


def _round_up(x, m):
    return ((x + m - 1) // m) * m


def _var_norm_sumsq_kernel(yp_ref, db_ref, out_ref, *,
                           tb, tf, grid_b, true_rows, need_mask):
    """Accumulate (8, tf) partial sums of (y_pred - delta)^2 over batch blocks."""
    p = pl.program_id(1)
    bi = pl.program_id(2)

    @pl.when(bi == 0)
    def _init():
        out_ref[...] = jnp.zeros_like(out_ref)

    # Upcast in-register; math in f32.
    diff = yp_ref[...].astype(jnp.float32) - db_ref[...].astype(jnp.float32)
    sq = diff * diff                                    # (tb, tf)

    def _accum(vals):
        # Layout-preserving reshape (last two dims stay (8, tf)); row-sums are
        # plain vreg adds and the store is a full lane-dense (8, tf) block.
        out_ref[...] += jnp.sum(vals.reshape(tb // 8, 8, tf), axis=0)

    if need_mask:
        global_blk = p * grid_b + bi
        # Edge = ragged last real block OR the clamped duplicate overhang block.
        is_edge = (global_blk + 1) * tb > true_rows

        @pl.when(jnp.logical_not(is_edge))
        def _plain():
            _accum(sq)

        @pl.when(is_edge)
        def _masked():
            row = global_blk * tb + jax.lax.broadcasted_iota(jnp.int32, sq.shape, 0)
            _accum(jnp.where(row < true_rows, sq, 0.0))
    else:
        _accum(sq)


def _pick_tiles(B_eff, F_eff, sum_itemsize, row_mult, tb=None, tf=None,
                target_total_bytes=8 * 1024 * 1024):
    """Pick (tb, tf): full-row (contiguous-DMA) feature tiles, shrink tb instead."""
    if tf is None:
        tf = F_eff
        if row_mult * F_eff * sum_itemsize > target_total_bytes and F_eff % 128 == 0:
            # A single full row at minimal tb exceeds the budget (very large F):
            # split F on the largest multiple-of-128 divisor that fits.
            d = (target_total_bytes // (row_mult * sum_itemsize)) // 128 * 128
            while d >= 128:
                if F_eff % d == 0:
                    tf = d
                    break
                d -= 128
    assert F_eff % tf == 0, "feature tile must divide (folded) feature dim"

    if tb is None:
        tb = (target_total_bytes // max(1, tf * sum_itemsize)) // row_mult * row_mult
    else:
        tb = _round_up(tb, row_mult)
    tb = max(row_mult, min(tb, _round_up(B_eff, row_mult)))
    return tb, tf


def var_norm_mse_loss(norm_loss_wghts, y_pred, delta_batch, *, tb=None, tf=None):
    """norm_loss_wghts: (F,) or (1, F); y_pred, delta_batch: (B, F) (any float dtype).

    Returns scalar f32 loss = mean_F( w * mean_B((y_pred - delta)^2) ).
    """
    B, F = y_pred.shape
    assert delta_batch.shape == (B, F)

    itemsize_yp = jnp.dtype(y_pred.dtype).itemsize
    itemsize_db = jnp.dtype(delta_batch.dtype).itemsize
    sum_itemsize = itemsize_yp + itemsize_db                # budget by TOTAL bytes/step
    row_mult = 16 if min(itemsize_yp, itemsize_db) < 4 else 8

    # --- Fold batch rows into lanes for small / non-128-multiple F ------------
    k = 1
    if F % 128 != 0:
        k = 128 // math.gcd(F, 128)
    if k > 1:
        Bp = _round_up(B, k)
        if Bp != B:
            y_pred = jnp.pad(y_pred, ((0, Bp - B), (0, 0)))       # zero rows: sq == 0
            delta_batch = jnp.pad(delta_batch, ((0, Bp - B), (0, 0)))
        y_pred = y_pred.reshape(Bp // k, k * F)                   # row-major: free view
        delta_batch = delta_batch.reshape(Bp // k, k * F)
        B_eff, F_eff = Bp // k, k * F
    else:
        B_eff, F_eff = B, F

    tb, tf = _pick_tiles(B_eff, F_eff, sum_itemsize, row_mult, tb=tb, tf=tf)
    grid_f = F_eff // tf

    nb_total = pl.cdiv(B_eff, tb)
    P = 2 if nb_total >= 2 else 1            # 2 parallel batch streams -> both v7x TCs
    grid_b = pl.cdiv(nb_total, P)
    need_mask = (B_eff % tb != 0) or (P * grid_b != nb_total)

    if P * grid_b == nb_total:
        def in_map(fi, p, bi):
            return (p * grid_b + bi, fi)
    else:
        def in_map(fi, p, bi):
            # Clamp the single overhanging duplicate block back in-bounds; its
            # rows are fully masked off inside the kernel.
            return (jnp.minimum(p * grid_b + bi, nb_total - 1), fi)

    kernel = functools.partial(
        _var_norm_sumsq_kernel,
        tb=tb, tf=tf, grid_b=grid_b, true_rows=B_eff, need_mask=need_mask)

    in_block_bytes = tb * tf * sum_itemsize
    out_block_bytes = 8 * tf * 4
    live_bytes = 2 * in_block_bytes + 2 * out_block_bytes
    # 32 MiB covers the default ~16 MiB live tiles (v5e scoped default is 16 MiB);
    # cap at v7x's 64 MiB physical per-TC VMEM.
    vmem_limit = min(max(32 * 1024 * 1024, live_bytes + (4 << 20)), 64 * 1024 * 1024)

    cost = pl.CostEstimate(
        flops=3 * B_eff * F_eff,
        transcendentals=0,
        bytes_accessed=B_eff * F_eff * sum_itemsize + P * 8 * F_eff * 4)

    sums = pl.pallas_call(
        kernel,
        out_shape=jax.ShapeDtypeStruct((P * 8, F_eff), jnp.float32),
        grid_spec=pltpu.PrefetchScalarGridSpec(
            num_scalar_prefetch=0,
            grid=(grid_f, P, grid_b),
            in_specs=[
                pl.BlockSpec((tb, tf), in_map),
                pl.BlockSpec((tb, tf), in_map),
            ],
            # Same (8, tf) block across the batch axis -> resident accumulator.
            out_specs=pl.BlockSpec((8, tf), lambda fi, p, bi: (p, fi)),
        ),
        compiler_params=pltpu.CompilerParams(
            dimension_semantics=("parallel", "parallel", "arbitrary"),
            vmem_limit_bytes=vmem_limit,
        ),
        cost_estimate=cost,
    )(y_pred, delta_batch)

    # Tiny finalize in plain JAX: collapse partitions + sublanes (+ fold groups),
    # weight, divide by the TRUE batch size, mean over features.
    w = jnp.asarray(norm_loss_wghts, jnp.float32).reshape(-1)
    per_col = jnp.sum(sums, axis=0)                              # (F_eff,)
    per_feat_sum = per_col.reshape(k, F).sum(axis=0) if k > 1 else per_col
    return jnp.mean(w * per_feat_sum) * (1.0 / B)


if __name__ == "__main__":
    key = jax.random.PRNGKey(0)
    k1, k2, k3 = jax.random.split(key, 3)

    def ref_loss(w, yp, db):
        d = yp.astype(jnp.float32) - db.astype(jnp.float32)
        return jnp.mean(jnp.asarray(w, jnp.float32) * jnp.mean(d * d, axis=0))

    # 1) Small F: folds (20, 32) -> (5, 128) for lane density; ragged batch block.
    B, F = 20, 32
    yp = jax.random.normal(k1, (B, F), dtype=jnp.float32)
    db = jax.random.normal(k2, (B, F), dtype=jnp.float32)
    w = jax.random.uniform(k3, (F,), dtype=jnp.float32, minval=0.5, maxval=1.5)
    out = jax.block_until_ready(var_norm_mse_loss(w, yp, db))
    ref = ref_loss(w, yp, db)
    assert jnp.allclose(out, ref, rtol=1e-5, atol=1e-6), (out, ref)

    # 2) Multi-block batch, 2-way parallel split with odd block count + ragged
    #    tail (exercises the clamped duplicate block and edge-gated mask).
    B2, F2 = 100, 128
    yp2 = jax.random.normal(k1, (B2, F2), dtype=jnp.float32)
    db2 = jax.random.normal(k2, (B2, F2), dtype=jnp.float32)
    w2 = jax.random.uniform(k3, (F2,), dtype=jnp.float32, minval=0.5, maxval=1.5)
    out2 = jax.block_until_ready(var_norm_mse_loss(w2, yp2, db2, tb=16))
    ref2 = ref_loss(w2, yp2, db2)
    assert jnp.allclose(out2, ref2, rtol=1e-5, atol=1e-6), (out2, ref2)

    # 3) bf16 inputs streamed natively (upcast inside the kernel), exact blocks.
    B3, F3 = 64, 256
    yp3 = jax.random.normal(k1, (B3, F3), dtype=jnp.float32).astype(jnp.bfloat16)
    db3 = jax.random.normal(k2, (B3, F3), dtype=jnp.float32).astype(jnp.bfloat16)
    w3 = jax.random.uniform(k3, (F3,), dtype=jnp.float32, minval=0.5, maxval=1.5)
    out3 = jax.block_until_ready(var_norm_mse_loss(w3, yp3, db3))
    ref3 = ref_loss(w3, yp3, db3)
    assert jnp.allclose(out3, ref3, rtol=1e-4, atol=1e-5), (out3, ref3)

    print("KERNEL_OK")
</pallas_src>

<mosaic_0001>
module attributes {stable_mosaic.version = 11 : i64} {
  func.func @_var_norm_sumsq_kernel(%arg0: i32, %arg1: i32, %arg2: i32, %arg3: memref<8x128xf32, #tpu.memory_space<vmem>>, %arg4: memref<8x128xf32, #tpu.memory_space<vmem>>, %arg5: memref<8x128xf32, #tpu.memory_space<vmem>>) attributes {dimension_semantics = [#tpu.dimension_semantics<parallel>, #tpu.dimension_semantics<parallel>, #tpu.dimension_semantics<arbitrary>], iteration_bounds = array<i64: 1, 1, 1>, scalar_prefetch = 0 : i64, scratch_operands = 0 : i64, tpu.core_type = #tpu.core_type<tc>, window_params = [{transform_indices = @transform_0, window_bounds = array<i64: 8, 128>}, {transform_indices = @transform_1, window_bounds = array<i64: 8, 128>}, {transform_indices = @transform_2, window_bounds = array<i64: 8, 128>}]} {
    %c0_i32 = arith.constant 0 : i32
    %0 = arith.cmpi eq, %arg2, %c0_i32 : i32
    %1 = arith.extui %0 : i1 to i32
    %c0_i32_0 = arith.constant 0 : i32
    %2 = arith.cmpi ne, %1, %c0_i32_0 : i32
    scf.if %2 {
      %cst = arith.constant 0.000000e+00 : f32
      %17 = vector.broadcast %cst : f32 to vector<8x128xf32>
      %c0_7 = arith.constant 0 : index
      %c0_8 = arith.constant 0 : index
      %18 = vector.load %arg5[%c0_7, %c0_8] : memref<8x128xf32, #tpu.memory_space<vmem>>, vector<8x128xf32>
      tpu.vector_store %arg5[%c0_7, %c0_8], %17 {strides = array<i32>} : memref<8x128xf32, #tpu.memory_space<vmem>>, vector<8x128xf32>,
    } else {
    }
    %c0 = arith.constant 0 : index
    %c0_1 = arith.constant 0 : index
    %3 = vector.load %arg3[%c0, %c0_1] : memref<8x128xf32, #tpu.memory_space<vmem>>, vector<8x128xf32>
    %c0_2 = arith.constant 0 : index
    %c0_3 = arith.constant 0 : index
    %4 = vector.load %arg4[%c0_2, %c0_3] : memref<8x128xf32, #tpu.memory_space<vmem>>, vector<8x128xf32>
    %5 = arith.subf %3, %4 : vector<8x128xf32>
    %6 = arith.mulf %5, %5 : vector<8x128xf32>
    %c1_i32 = arith.constant 1 : i32
    %7 = arith.muli %arg1, %c1_i32 : i32
    %8 = arith.addi %7, %arg2 : i32
    %c1_i32_4 = arith.constant 1 : i32
    %9 = arith.addi %8, %c1_i32_4 : i32
    %c8_i32 = arith.constant 8 : i32
    %10 = arith.muli %9, %c8_i32 : i32
    %c5_i32 = arith.constant 5 : i32
    %11 = arith.cmpi sgt, %10, %c5_i32 : i32
    %true = arith.constant true
    %12 = arith.xori %11, %true : i1
    %13 = arith.extui %12 : i1 to i32
    %c0_i32_5 = arith.constant 0 : i32
    %14 = arith.cmpi ne, %13, %c0_i32_5 : i32
    scf.if %14 {
      %c0_7 = arith.constant 0 : index
      %c0_8 = arith.constant 0 : index
      %17 = vector.load %arg5[%c0_7, %c0_8] : memref<8x128xf32, #tpu.memory_space<vmem>>, vector<8x128xf32>
      %18 = vector.shape_cast %6 : vector<8x128xf32> to vector<1x8x128xf32>
      %cst = arith.constant dense<0.000000e+00> : vector<8x128xf32>
      %19 = vector.multi_reduction <add>, %18, %cst [0] : vector<1x8x128xf32> to vector<8x128xf32>
      %20 = arith.addf %17, %19 : vector<8x128xf32>
      %c0_9 = arith.constant 0 : index
      %c0_10 = arith.constant 0 : index
      %21 = vector.load %arg5[%c0_9, %c0_10] : memref<8x128xf32, #tpu.memory_space<vmem>>, vector<8x128xf32>
      tpu.vector_store %arg5[%c0_9, %c0_10], %20 {strides = array<i32>} : memref<8x128xf32, #tpu.memory_space<vmem>>, vector<8x128xf32>,
    } else {
    }
    %15 = arith.extui %11 : i1 to i32
    %c0_i32_6 = arith.constant 0 : i32
    %16 = arith.cmpi ne, %15, %c0_i32_6 : i32
    scf.if %16 {
      %c8_i32_7 = arith.constant 8 : i32
      %17 = arith.muli %8, %c8_i32_7 : i32
      %18 = tpu.iota {dimensions = array<i32: 0>} : vector<8x128xi32>
      %19 = vector.broadcast %17 : i32 to vector<8x128xi32>
      %20 = arith.addi %19, %18 : vector<8x128xi32>
      %c5_i32_8 = arith.constant 5 : i32
      %21 = vector.broadcast %c5_i32_8 : i32 to vector<8x128xi32>
      %22 = arith.cmpi slt, %20, %21 : vector<8x128xi32>
      %cst = arith.constant 0.000000e+00 : f32
      %23 = vector.broadcast %cst : f32 to vector<8x128xf32>
      %24 = arith.select %22, %6, %23 : vector<8x128xi1>, vector<8x128xf32>
      %c0_9 = arith.constant 0 : index
      %c0_10 = arith.constant 0 : index
      %25 = vector.load %arg5[%c0_9, %c0_10] : memref<8x128xf32, #tpu.memory_space<vmem>>, vector<8x128xf32>
      %26 = vector.shape_cast %24 : vector<8x128xf32> to vector<1x8x128xf32>
      %cst_11 = arith.constant dense<0.000000e+00> : vector<8x128xf32>
      %27 = vector.multi_reduction <add>, %26, %cst_11 [0] : vector<1x8x128xf32> to vector<8x128xf32>
      %28 = arith.addf %25, %27 : vector<8x128xf32>
      %c0_12 = arith.constant 0 : index
      %c0_13 = arith.constant 0 : index
      %29 = vector.load %arg5[%c0_12, %c0_13] : memref<8x128xf32, #tpu.memory_space<vmem>>, vector<8x128xf32>
      tpu.vector_store %arg5[%c0_12, %c0_13], %28 {strides = array<i32>} : memref<8x128xf32, #tpu.memory_space<vmem>>, vector<8x128xf32>,
    } else {
    }
    return
  }
  func.func @transform_0(%arg0: i32, %arg1: i32, %arg2: i32) -> (i32, i32) {
    %c1_i32 = arith.constant 1 : i32
    %0 = arith.muli %arg1, %c1_i32 : i32
    %1 = arith.addi %0, %arg2 : i32
    %c0_i32 = arith.constant 0 : i32
    return %1, %arg0 : i32, i32
  }
  func.func @transform_1(%arg0: i32, %arg1: i32, %arg2: i32) -> (i32, i32) {
    %c1_i32 = arith.constant 1 : i32
    %0 = arith.muli %arg1, %c1_i32 : i32
    %1 = arith.addi %0, %arg2 : i32
    %c0_i32 = arith.constant 0 : i32
    return %1, %arg0 : i32, i32
  }
  func.func @transform_2(%arg0: i32, %arg1: i32, %arg2: i32) -> (i32, i32) {
    %c0_i32 = arith.constant 0 : i32
    return %arg1, %arg0 : i32, i32
  }
}

</mosaic_0001>

<llo_original>
// kernel: tpu_custom_call.1
$region0: #{tpu_custom_call.1}
  #allocation0 [shape = 'u32[]', space=smem, size = 0x4, offset = 0x4, fixed_abs, tag = 'smem constant byte address 0x4 - core index']
  #allocation1 [shape = 'u32[144,128]{1,0:T(1,128)}', space=vmem, size = 0x12000, scoped, tag = 'internal scratch']
  %s0 = inlined_call_operand.hbm [shape: f32[5,128], index: 0, kind: input, shape index: {}]
  %s1 = inlined_call_operand.hbm [shape: f32[5,128], index: 1, kind: input, shape index: {}]
  %s2 = inlined_call_operand.hbm [shape: f32[8,128], index: 2, kind: output, shape index: {}]
  %s3 = sld [smem:[#allocation0]]
  $region38: #{tpu_custom_call.1} parent=0
    _
  %s5 = ssub.s32 1, %s3
  %s6 = scalar_select 0, %s5, %s3
  $region1: #{tpu_custom_call.1} parent=0
    #allocation2 [shape = 'u8[4096]{0}', space=vmem, size = 0x1000, scoped, tag = 'input window, operand 0, single buffered']
    #allocation3 [shape = 's32[1]{0}', space=sflag, size = 0x4, scoped, tag = 'scoped memory for tpu_custom_call.1']
    #allocation4 [shape = 's32[1]{0}', space=sflag, size = 0x4, scoped, tag = 'scoped memory for tpu_custom_call.1']
    #allocation5 [shape = 'u8[4096]{0}', space=vmem, size = 0x1000, scoped, tag = 'input window, operand 1, single buffered']
    #allocation6 [shape = 's32[1]{0}', space=sflag, size = 0x4, scoped, tag = 'scoped memory for tpu_custom_call.1']
    #allocation7 [shape = 'u8[4096]{0}', space=vmem, size = 0x1000, scoped, tag = 'output window, operand 0, single buffered']
    %7 = vsyncpa [#allocation3], 0
    %8 = vsyncpa [#allocation6], 0
    %9 = vsyncpa [#allocation4], 0
    // Predicated region
    $region2: #{tpu_custom_call.1} parent=1 // pred_check
      _
    $region3: #{tpu_custom_call.1} parent=1 // pred_check_branch
      %11 = sbr.rel (0) target = $region5
    $region4: #{tpu_custom_call.1} parent=1 // pred_region
      %s12 = sadd.s32 0, 0
      %s14 = ssub.s32 128, 128
      %15 = vsyncadd [#allocation3], %s14
      %s16 = smul.addr %s12, 128
      %s17 = scalar_lea.hbm %s0, %s16
      %s19 = sshll.u32 [#allocation2], 4
      %s20 = int_to_ptr.vmem [resolvable:$true] %s19
      %22 = dma.hbm_to_vmem [thread:$0]  %s17, 128, %s20, [#allocation3]
    $region5: #{tpu_custom_call.1} parent=1 // pred_fallthru
      _
    // Predicated region
    $region6: #{tpu_custom_call.1} parent=1 // pred_check
      _
    $region7: #{tpu_custom_call.1} parent=1 // pred_check_branch
      %24 = sbr.rel (0) target = $region9
    $region8: #{tpu_custom_call.1} parent=1 // pred_region
      %s25 = sadd.s32 0, 0
      %s27 = ssub.s32 128, 128
      %28 = vsyncadd [#allocation6], %s27
      %s29 = smul.addr %s25, 128
      %s30 = scalar_lea.hbm %s1, %s29
      %s32 = sshll.u32 [#allocation5], 4
      %s33 = int_to_ptr.vmem [resolvable:$true] %s32
      %35 = dma.hbm_to_vmem [thread:$0]  %s30, 128, %s33, [#allocation6]
    $region9: #{tpu_custom_call.1} parent=1 // pred_fallthru
      _
    // Predicated region
    $region10: #{tpu_custom_call.1} parent=1 // pred_check
      _
    $region11: #{tpu_custom_call.1} parent=1 // pred_check_branch
      %37 = sbr.rel (0) target = $region13
    $region12: #{tpu_custom_call.1} parent=1 // pred_region
      %38 = dma.done [#allocation3], 128
    $region13: #{tpu_custom_call.1} parent=1 // pred_fallthru
      _
    // Predicated region
    $region14: #{tpu_custom_call.1} parent=1 // pred_check
      _
    $region15: #{tpu_custom_call.1} parent=1 // pred_check_branch
      %40 = sbr.rel (0) target = $region17
    $region16: #{tpu_custom_call.1} parent=1 // pred_region
      %41 = dma.done [#allocation6], 128
    $region17: #{tpu_custom_call.1} parent=1 // pred_fallthru
      _
    %s42 = sadd.s32 0, 0
    %s43 = sadd.s32 0, 0
    %p44 = scmp.eq.s32.totalorder 0, 0
    // Predicated region
    $region18: #{tpu_custom_call.1} parent=1 // pred_check
      %p45 = pneg %p44
    $region19: #{tpu_custom_call.1} parent=1 // pred_check_branch
      %47 = sbr.rel (%p45) target = $region21
    $region20: #{tpu_custom_call.1} parent=1 // pred_region
      %48 = vst [vmem:[#allocation7] sm:$0xff] 0.0
    $region21: #{tpu_custom_call.1} parent=1 // pred_fallthru
      _
    %v49 = vld [vmem:[#allocation2] sm:$0xff]
    %v50 = vld [vmem:[#allocation5] sm:$0xff]
    %v51 = vsub.f32 %v49, %v50
    %v52 = vmul.f32 %v51, %v51
    %s53 = sadd.s32 0, 0
    %s54 = sadd.s32 %s53, 1
    %s55 = smul.u32 %s54, 8
    %p56 = scmp.gt.s32.totalorder %s55, 5
    %p57 = scmp.le.s32.totalorder %s55, 5
    // Predicated region
    $region22: #{tpu_custom_call.1} parent=1 // pred_check
      %p58 = pneg %p57
    $region23: #{tpu_custom_call.1} parent=1 // pred_check_branch
      %60 = sbr.rel (%p58) target = $region25
    $region24: #{tpu_custom_call.1} parent=1 // pred_region
      %v61 = vld [vmem:[#allocation7] sm:$0xff]
      %v62 = vadd.f32 %v52, 0.0
      %v63 = vadd.f32 %v61, %v62
      %64 = vst [vmem:[#allocation7] sm:$0xff] %v63
    $region25: #{tpu_custom_call.1} parent=1 // pred_fallthru
      _
    // Predicated region
    $region26: #{tpu_custom_call.1} parent=1 // pred_check
      %p65 = pneg %p56
    $region27: #{tpu_custom_call.1} parent=1 // pred_check_branch
      %67 = sbr.rel (%p65) target = $region29
    $region28: #{tpu_custom_call.1} parent=1 // pred_region
      %s68 = smul.u32 %s53, 8
      %v69 = vlaneseq
      %v70 = vshrl.u32 %v69, 7
      %v71 = vstv %s68
      %v72 = vadd.s32 %v71, %v70
      %vm73 = vcmp.lt.s32.totalorder %v72, 5
      %v74 = vsel %vm73, %v52, 0.0
      %v75 = vld [vmem:[#allocation7] sm:$0xff]
      %v76 = vadd.f32 %v74, 0.0
      %v77 = vadd.f32 %v75, %v76
      %78 = vst [vmem:[#allocation7] sm:$0xff] %v77
    $region29: #{tpu_custom_call.1} parent=1 // pred_fallthru
      _
    // Predicated region
    $region30: #{tpu_custom_call.1} parent=1 // pred_check
      _
    $region31: #{tpu_custom_call.1} parent=1 // pred_check_branch
      %80 = sbr.rel (0) target = $region33
    $region32: #{tpu_custom_call.1} parent=1 // pred_region
      %s82 = ssub.s32 128, 128
      %83 = vsyncadd [#allocation4], %s82
      %s85 = sshll.u32 [#allocation7], 4
      %s86 = int_to_ptr.vmem [resolvable:$true] %s85
      %88 = dma.vmem_to_hbm [thread:$0]  %s86, 128, %s2, [#allocation4]
    $region33: #{tpu_custom_call.1} parent=1 // pred_fallthru
      _
    // Predicated region
    $region34: #{tpu_custom_call.1} parent=1 // pred_check
      _
    $region35: #{tpu_custom_call.1} parent=1 // pred_check_branch
      %90 = sbr.rel (0) target = $region37
    $region36: #{tpu_custom_call.1} parent=1 // pred_region
      %91 = dma.done [#allocation4], 128
    $region37: #{tpu_custom_call.1} parent=1 // pred_fallthru
      _
    %92 = vsyncpa [#allocation3], 1
    %93 = vsyncpa [#allocation6], 1
    %94 = vsyncpa [#allocation4], 1

</llo_original>
